<compile_context>
chip_gen: v7x
topology: tpu7x:2x2x1
jax: 0.10.0
libtpu: 0.0.40
codegen_flags: <defaults>
</compile_context>

<pallas_src>
import functools

import jax
import jax.numpy as jnp
from jax.experimental import pallas as pl
from jax.experimental.pallas import tpu as pltpu


def rnn_seq_kernel(ids_ref,            # SMEM  [T, B] int32  (scalar prefetch)
                   h0_ref,             # VMEM  [B, H]
                   wx_ref,             # VMEM  [input_size, H + O]  fused i2h|i2o (input rows)
                   wh_ref,             # VMEM  [H, H + O]           fused i2h|i2o (hidden rows)
                   b_ref,              # VMEM  [1, H + O]           fused bias
                   out_ref,            # VMEM  [B, H + O]           (time dim squeezed)
                   h_scr,              # VMEM scratch [B, H] f32, persists across grid steps
                   *, batch, hidden_size):
    t = pl.program_id(0)

    @pl.when(t == 0)
    def _():
        h_scr[...] = h0_ref[...]

    # x is one-hot, so x @ Wx is a row gather of the fused input weight.
    rows = [wx_ref[pl.ds(ids_ref[t, b], 1), :] for b in range(batch)]
    xw = jnp.concatenate(rows, axis=0)                       # [B, H + O]

    h = h_scr[...]
    fused = (xw
             + jnp.dot(h, wh_ref[...], preferred_element_type=jnp.float32)
             + b_ref[...])                                   # [B, H + O]

    h_new = fused[:, :hidden_size]                           # [B, H]
    logits = fused[:, hidden_size:]                          # [B, O]

    # LogSoftmax over dim=1 (Mosaic masks the padded lanes of the 18-wide slice).
    m = jnp.max(logits, axis=1, keepdims=True)
    shifted = logits - m
    lse = jnp.log(jnp.sum(jnp.exp(shifted), axis=1, keepdims=True))
    log_probs = shifted - lse

    h_scr[...] = h_new
    out_ref[...] = jnp.concatenate([h_new, log_probs], axis=1).astype(out_ref.dtype)


def rnn_forward(letter_ids, h0, params):
    """Run the char-RNN over a whole sequence in one pallas_call.

    letter_ids : [T, B] int32 character indices (rows of the one-hot input)
    h0         : [B, H] initial hidden state
    Returns (log_probs_seq [T, B, O], hidden_seq [T, B, H]); hidden_seq[-1] is
    the final hidden state, exactly as looping RNN.forward would produce.
    """
    T, B = letter_ids.shape
    wx, wh, b = params["wx"], params["wh"], params["b"]
    input_size, dout = wx.shape
    H = wh.shape[0]

    kernel = functools.partial(rnn_seq_kernel, batch=B, hidden_size=H)

    fused_out = pl.pallas_call(
        kernel,
        out_shape=jax.ShapeDtypeStruct((T, B, dout), jnp.float32),
        grid_spec=pltpu.PrefetchScalarGridSpec(
            num_scalar_prefetch=1,
            grid=(T,),
            in_specs=[
                pl.BlockSpec((B, H), lambda t, ids: (0, 0)),              # h0
                pl.BlockSpec((input_size, dout), lambda t, ids: (0, 0)),  # Wx (resident)
                pl.BlockSpec((H, dout), lambda t, ids: (0, 0)),           # Wh (resident)
                pl.BlockSpec((1, dout), lambda t, ids: (0, 0)),           # bias (resident)
            ],
            out_specs=pl.BlockSpec((None, B, dout), lambda t, ids: (t, 0, 0)),
            scratch_shapes=[pltpu.VMEM((B, H), jnp.float32)],
        ),
        compiler_params=pltpu.CompilerParams(
            dimension_semantics=("arbitrary",),   # sequential recurrence over time
        ),
    )(letter_ids, h0, wx, wh, b)

    hidden_seq = fused_out[:, :, :H]
    log_probs_seq = fused_out[:, :, H:]
    return log_probs_seq, hidden_seq


def init_params(key, input_size, hidden_size, output_size):
    """PyTorch nn.Linear-style init; weights stored transposed ([in, out])."""
    k = jax.random.split(key, 4)
    fan_in = input_size + hidden_size
    bound = 1.0 / jnp.sqrt(fan_in)
    w_i2h = jax.random.uniform(k[0], (fan_in, hidden_size), jnp.float32, -bound, bound)
    b_i2h = jax.random.uniform(k[1], (1, hidden_size), jnp.float32, -bound, bound)
    w_i2o = jax.random.uniform(k[2], (fan_in, output_size), jnp.float32, -bound, bound)
    b_i2o = jax.random.uniform(k[3], (1, output_size), jnp.float32, -bound, bound)
    return {"w_i2h": w_i2h, "b_i2h": b_i2h, "w_i2o": w_i2o, "b_i2o": b_i2o}


def pack_params(raw, input_size):
    """Fuse i2h|i2o along the output axis; split the input vs. hidden rows."""
    w_full = jnp.concatenate([raw["w_i2h"], raw["w_i2o"]], axis=1)   # [in+hid, H+O]
    b_full = jnp.concatenate([raw["b_i2h"], raw["b_i2o"]], axis=1)   # [1, H+O]
    return {
        "wx": w_full[:input_size, :],   # rows selected by the one-hot input (gathered)
        "wh": w_full[input_size:, :],   # rows hit by the hidden state (single matmul)
        "b": b_full,
    }


if __name__ == "__main__":
    # Shapes consistent with the char-RNN: n_letters=57, hidden=128,
    # n_categories=18; a 6-character sequence (like 'Albert'), batch=2.
    T, B = 6, 2
    input_size, hidden_size, output_size = 57, 128, 18

    key = jax.random.PRNGKey(0)
    k_ids, k_p = jax.random.split(key)

    letter_ids = jax.random.randint(k_ids, (T, B), 0, input_size, dtype=jnp.int32)
    h0 = jnp.zeros((B, hidden_size), dtype=jnp.float32)    # initHidden()

    raw = init_params(k_p, input_size, hidden_size, output_size)
    params = pack_params(raw, input_size)

    log_probs_seq, hidden_seq = rnn_forward(letter_ids, h0, params)
    jax.block_until_ready((log_probs_seq, hidden_seq))

    # Reference: plain JAX loop using the exact PyTorch forward math.
    x_seq = jax.nn.one_hot(letter_ids, input_size, dtype=jnp.float32)   # [T, B, in]
    h = h0
    ref_outs, ref_hs = [], []
    for t in range(T):
        combined = jnp.concatenate([x_seq[t], h], axis=1)
        h = combined @ raw["w_i2h"] + raw["b_i2h"]
        logits = combined @ raw["w_i2o"] + raw["b_i2o"]
        ref_outs.append(jax.nn.log_softmax(logits, axis=1))
        ref_hs.append(h)
    ref_out = jnp.stack(ref_outs)
    ref_h = jnp.stack(ref_hs)

    assert log_probs_seq.shape == (T, B, output_size)
    assert hidden_seq.shape == (T, B, hidden_size)
    assert jnp.allclose(log_probs_seq, ref_out, atol=1e-4), \
        float(jnp.max(jnp.abs(log_probs_seq - ref_out)))
    assert jnp.allclose(hidden_seq, ref_h, atol=1e-4), \
        float(jnp.max(jnp.abs(hidden_seq - ref_h)))

    print("KERNEL_OK")
</pallas_src>

<mosaic_0001>
module attributes {stable_mosaic.version = 11 : i64} {
  func.func @rnn_seq_kernel(%arg0: i32, %arg1: memref<6x2xi32, #tpu.memory_space<smem>>, %arg2: memref<2x128xf32, #tpu.memory_space<vmem>>, %arg3: memref<57x146xf32, #tpu.memory_space<vmem>>, %arg4: memref<128x146xf32, #tpu.memory_space<vmem>>, %arg5: memref<1x146xf32, #tpu.memory_space<vmem>>, %arg6: memref<1x2x146xf32, #tpu.memory_space<vmem>>, %arg7: memref<2x128xf32, #tpu.memory_space<vmem>>) attributes {dimension_semantics = [#tpu.dimension_semantics<arbitrary>], iteration_bounds = array<i64: 6>, scalar_prefetch = 1 : i64, scratch_operands = 1 : i64, tpu.core_type = #tpu.core_type<tc>, window_params = [{pipeline_mode = #tpu.pipeline_mode<synchronous>, transform_indices = @transform_0, window_bounds = array<i64: 2, 128>}, {pipeline_mode = #tpu.pipeline_mode<synchronous>, transform_indices = @transform_1, window_bounds = array<i64: 57, 146>}, {pipeline_mode = #tpu.pipeline_mode<synchronous>, transform_indices = @transform_2, window_bounds = array<i64: 128, 146>}, {pipeline_mode = #tpu.pipeline_mode<synchronous>, transform_indices = @transform_3, window_bounds = array<i64: 1, 146>}, {transform_indices = @transform_4, window_bounds = array<i64: 1, 2, 146>}]} {
    %c0_i32 = arith.constant 0 : i32
    %0 = arith.cmpi eq, %arg0, %c0_i32 : i32
    %1 = arith.extui %0 : i1 to i32
    %c0_i32_0 = arith.constant 0 : i32
    %2 = arith.cmpi ne, %1, %c0_i32_0 : i32
    scf.if %2 {
      %c0_16 = arith.constant 0 : index
      %c0_17 = arith.constant 0 : index
      %36 = vector.load %arg2[%c0_16, %c0_17] : memref<2x128xf32, #tpu.memory_space<vmem>>, vector<2x128xf32>
      %c0_18 = arith.constant 0 : index
      %c0_19 = arith.constant 0 : index
      %37 = vector.load %arg7[%c0_18, %c0_19] : memref<2x128xf32, #tpu.memory_space<vmem>>, vector<2x128xf32>
      tpu.vector_store %arg7[%c0_18, %c0_19], %36 {strides = array<i32>} : memref<2x128xf32, #tpu.memory_space<vmem>>, vector<2x128xf32>,
    } else {
    }
    %3 = arith.index_cast %arg0 : i32 to index
    %c0 = arith.constant 0 : index
    %4 = memref.load %arg1[%3, %c0] : memref<6x2xi32, #tpu.memory_space<smem>>
    %5 = arith.index_cast %4 : i32 to index
    %c0_1 = arith.constant 0 : index
    %6 = vector.load %arg3[%5, %c0_1] : memref<57x146xf32, #tpu.memory_space<vmem>>, vector<1x146xf32>
    %7 = arith.index_cast %arg0 : i32 to index
    %c1 = arith.constant 1 : index
    %8 = memref.load %arg1[%7, %c1] : memref<6x2xi32, #tpu.memory_space<smem>>
    %9 = arith.index_cast %8 : i32 to index
    %c0_2 = arith.constant 0 : index
    %10 = vector.load %arg3[%9, %c0_2] : memref<57x146xf32, #tpu.memory_space<vmem>>, vector<1x146xf32>
    %11 = tpu.concatenate %6, %10 in 0 : vector<1x146xf32>, vector<1x146xf32> -> vector<2x146xf32>
    %c0_3 = arith.constant 0 : index
    %c0_4 = arith.constant 0 : index
    %12 = vector.load %arg7[%c0_3, %c0_4] : memref<2x128xf32, #tpu.memory_space<vmem>>, vector<2x128xf32>
    %c0_5 = arith.constant 0 : index
    %c0_6 = arith.constant 0 : index
    %13 = vector.load %arg4[%c0_5, %c0_6] : memref<128x146xf32, #tpu.memory_space<vmem>>, vector<128x146xf32>
    %cst = arith.constant dense<0.000000e+00> : vector<2x146xf32>
    %14 = tpu.matmul %12, %13, %cst {dimension_numbers = #tpu.dot_dimension_numbers<[1], [0], [0], [1], [0, 0, 1, 1], [], []>} : vector<2x128xf32>, vector<128x146xf32>, vector<2x146xf32> -> vector<2x146xf32>
    %15 = arith.addf %11, %14 : vector<2x146xf32>
    %c0_7 = arith.constant 0 : index
    %c0_8 = arith.constant 0 : index
    %16 = vector.load %arg5[%c0_7, %c0_8] : memref<1x146xf32, #tpu.memory_space<vmem>>, vector<1x146xf32>
    %17 = vector.broadcast %16 : vector<1x146xf32> to vector<2x146xf32>
    %18 = arith.addf %15, %17 : vector<2x146xf32>
    %19 = vector.extract_strided_slice %18 {offsets = [0, 0], sizes = [2, 128], strides = [1, 1]} : vector<2x146xf32> to vector<2x128xf32>
    %20 = vector.extract_strided_slice %18 {offsets = [0, 128], sizes = [2, 18], strides = [1, 1]} : vector<2x146xf32> to vector<2x18xf32>
    %cst_9 = arith.constant dense<0xFF800000> : vector<2xf32>
    %21 = vector.multi_reduction <maximumf>, %20, %cst_9 [1] : vector<2x18xf32> to vector<2xf32>
    %22 = vector.shape_cast %21 : vector<2xf32> to vector<2x1xf32>
    %23 = vector.broadcast %22 : vector<2x1xf32> to vector<2x18xf32>
    %24 = arith.subf %20, %23 : vector<2x18xf32>
    %25 = math.exp %24 : vector<2x18xf32>
    %cst_10 = arith.constant dense<0.000000e+00> : vector<2xf32>
    %26 = vector.multi_reduction <add>, %25, %cst_10 [1] : vector<2x18xf32> to vector<2xf32>
    %27 = vector.shape_cast %26 : vector<2xf32> to vector<2x1xf32>
    %28 = math.log %27 : vector<2x1xf32>
    %29 = vector.broadcast %28 : vector<2x1xf32> to vector<2x18xf32>
    %30 = arith.subf %24, %29 : vector<2x18xf32>
    %c0_11 = arith.constant 0 : index
    %c0_12 = arith.constant 0 : index
    %31 = vector.load %arg7[%c0_11, %c0_12] : memref<2x128xf32, #tpu.memory_space<vmem>>, vector<2x128xf32>
    tpu.vector_store %arg7[%c0_11, %c0_12], %19 {strides = array<i32>} : memref<2x128xf32, #tpu.memory_space<vmem>>, vector<2x128xf32>,
    %32 = tpu.concatenate %19, %30 in 1 : vector<2x128xf32>, vector<2x18xf32> -> vector<2x146xf32>
    %c0_13 = arith.constant 0 : index
    %c0_14 = arith.constant 0 : index
    %c0_15 = arith.constant 0 : index
    %33 = vector.load %arg6[%c0_13, %c0_14, %c0_15] : memref<1x2x146xf32, #tpu.memory_space<vmem>>, vector<1x2x146xf32>
    %34 = vector.shape_cast %33 : vector<1x2x146xf32> to vector<2x146xf32>
    %35 = vector.shape_cast %32 : vector<2x146xf32> to vector<1x2x146xf32>
    tpu.vector_store %arg6[%c0_13, %c0_14, %c0_15], %35 {strides = array<i32>} : memref<1x2x146xf32, #tpu.memory_space<vmem>>, vector<1x2x146xf32>,
    return
  }
  func.func @transform_0(%arg0: i32, %arg1: memref<6x2xi32, #tpu.memory_space<smem>>) -> (i32, i32) {
    %c0_i32 = arith.constant 0 : i32
    %c0_i32_0 = arith.constant 0 : i32
    %c0_i32_1 = arith.constant 0 : i32
    return %c0_i32, %c0_i32_0 : i32, i32
  }
  func.func @transform_1(%arg0: i32, %arg1: memref<6x2xi32, #tpu.memory_space<smem>>) -> (i32, i32) {
    %c0_i32 = arith.constant 0 : i32
    %c0_i32_0 = arith.constant 0 : i32
    %c0_i32_1 = arith.constant 0 : i32
    return %c0_i32, %c0_i32_0 : i32, i32
  }
  func.func @transform_2(%arg0: i32, %arg1: memref<6x2xi32, #tpu.memory_space<smem>>) -> (i32, i32) {
    %c0_i32 = arith.constant 0 : i32
    %c0_i32_0 = arith.constant 0 : i32
    %c0_i32_1 = arith.constant 0 : i32
    return %c0_i32, %c0_i32_0 : i32, i32
  }
  func.func @transform_3(%arg0: i32, %arg1: memref<6x2xi32, #tpu.memory_space<smem>>) -> (i32, i32) {
    %c0_i32 = arith.constant 0 : i32
    %c0_i32_0 = arith.constant 0 : i32
    %c0_i32_1 = arith.constant 0 : i32
    return %c0_i32, %c0_i32_0 : i32, i32
  }
  func.func @transform_4(%arg0: i32, %arg1: memref<6x2xi32, #tpu.memory_space<smem>>) -> (i32, i32, i32) {
    %c0_i32 = arith.constant 0 : i32
    %c0_i32_0 = arith.constant 0 : i32
    %c0_i32_1 = arith.constant 0 : i32
    return %arg0, %c0_i32, %c0_i32_0 : i32, i32, i32
  }
}

</mosaic_0001>

<llo_original>
// kernel: tpu_custom_call.1
$region0: #{tpu_custom_call.1}
  #allocation0 [shape = 'u32[]', space=smem, size = 0x4, offset = 0x4, fixed_abs, tag = 'smem constant byte address 0x4 - core index']
  #allocation1 [shape = 'u32[144,128]{1,0:T(1,128)}', space=vmem, size = 0x12000, scoped, tag = 'internal scratch']
  #allocation2 [shape = 'f32[2,128]{1,0:T(2,128)}', space=vmem, size = 0x400, scoped, tag = 'scratch operand']
  #allocation3 [shape = 's32[1]{0}', space=sflag, size = 0x4, scoped, tag = 'scoped memory for tpu_custom_call.1']
  #allocation4 [shape = 'u8[4096]{0}', space=smem, size = 0x1000, scoped, tag = 'prefetched SMEM operand 0']
  %s0 = inlined_call_operand.vmem [shape: s32[6,2], index: 0, kind: input, shape index: {}]
  %s1 = inlined_call_operand.vmem [shape: f32[2,128], index: 1, kind: input, shape index: {}]
  %s2 = inlined_call_operand.vmem [shape: f32[57,146], index: 2, kind: input, shape index: {}]
  %s3 = inlined_call_operand.vmem [shape: f32[128,146], index: 3, kind: input, shape index: {}]
  %s4 = inlined_call_operand.vmem [shape: f32[1,146], index: 4, kind: input, shape index: {}]
  %s5 = inlined_call_operand.hbm [shape: f32[6,2,146], index: 5, kind: output, shape index: {}]
  %s6 = sld [smem:[#allocation0]]
  $region53: #{tpu_custom_call.1} parent=0
    _
  %s8 = ssub.s32 1, %s6
  %s9 = scalar_select 0, %s8, %s6
  %s10 = sshll.u32 %s0, 4
  %s11 = int_to_ptr.vmem [resolvable:$true] %s10
  %13 = dma.vmem_to_smem %s11, 128, [#allocation4], [#allocation3]
  %14 = dma.done [#allocation3], 128
  %15 = sfence
  $region1: #{tpu_custom_call.1} parent=0
    #allocation5 [shape = 'u8[4096]{0}', space=vmem, size = 0x1000, scoped, tag = 'output window, operand 0']
    #allocation6 [shape = 's32[2]{0}', space=sflag, size = 0x8, scoped, tag = 'scoped memory for tpu_custom_call.1']
    %16 = vsyncpa [#allocation6], 0
    %s17 = scalar_lea.sflag [#allocation6], 1
    %18 = vsyncpa %s17, 0
    loop: start=0, step=1, limit=8
    $region2: #{tpu_custom_call.1} parent=1 // loop_pre_header
      _
    $region3: #{tpu_custom_call.1} parent=1 // loop_header
      %s20 = sphi 0, %s24
      %p21 = scmp.ge.s32.totalorder %s20, 8
      %s28 = sphi 0, %s28
      %s30 = sphi 0, %s28
      %s31 = sphi 0, %s30
      %s45 = sphi 0, %s31
      %s49 = sphi 0, %s49
      %s51 = sphi 0, %s49
      %s52 = sphi 0, %s51
      %s66 = sphi 0, %s52
      %s70 = sphi 0, %s70
      %s72 = sphi 0, %s70
      %s73 = sphi 0, %s72
      %s87 = sphi 0, %s73
      %s91 = sphi 0, %s91
      %s93 = sphi 0, %s91
      %s94 = sphi 0, %s93
      %s108 = sphi 0, %s94
      %s114 = sphi 0, %s116
      %s117 = sphi 0, %s114
      %s118 = sphi 0, %s117
      %s134 = sphi 0, %s118
    $region4: #{tpu_custom_call.1} parent=1 // loop_header_branch
      %23 = sbr.rel (%p21) target = $region8
    $region5: #{tpu_custom_call.1} parent=1 // loop_body
      %s25 = ssub.s32 %s20, 1
      %s26 = ssub.s32 %s20, 2
      %s27 = sadd.s32 %s20, 1
      %s29 = sadd.s32 %s28, 1
      %p32 = scmp.eq.s32.totalorder %s20, 5
      %p33 = scmp.ne.s32.totalorder %s28, %s30
      %p34 = scmp.eq.s32.totalorder %s20, 0
      %p35 = por %p33, %p34
      %p36 = scmp.ne.s32.totalorder %s28, %s30
      %p37 = scmp.eq.s32.totalorder %s25, 5
      %p38 = por %p36, %p37
      %p39 = scmp.ne.s32.totalorder %s30, %s31
      %p40 = scmp.eq.s32.totalorder %s25, 0
      %p41 = por %p39, %p40
      %p42 = scmp.ne.s32.totalorder %s30, %s31
      %p43 = scmp.eq.s32.totalorder %s26, 5
      %p44 = por %p42, %p43
      %p46 = scmp.ne.s32.totalorder %s31, %s45
      %p47 = scmp.eq.s32.totalorder %s26, 0
      %p48 = por %p46, %p47
      %s50 = sadd.s32 %s49, 1
      %p53 = scmp.eq.s32.totalorder %s20, 5
      %p54 = scmp.ne.s32.totalorder %s49, %s51
      %p55 = scmp.eq.s32.totalorder %s20, 0
      %p56 = por %p54, %p55
      %p57 = scmp.ne.s32.totalorder %s49, %s51
      %p58 = scmp.eq.s32.totalorder %s25, 5
      %p59 = por %p57, %p58
      %p60 = scmp.ne.s32.totalorder %s51, %s52
      %p61 = scmp.eq.s32.totalorder %s25, 0
      %p62 = por %p60, %p61
      %p63 = scmp.ne.s32.totalorder %s51, %s52
      %p64 = scmp.eq.s32.totalorder %s26, 5
      %p65 = por %p63, %p64
      %p67 = scmp.ne.s32.totalorder %s52, %s66
      %p68 = scmp.eq.s32.totalorder %s26, 0
      %p69 = por %p67, %p68
      %s71 = sadd.s32 %s70, 1
      %p74 = scmp.eq.s32.totalorder %s20, 5
      %p75 = scmp.ne.s32.totalorder %s70, %s72
      %p76 = scmp.eq.s32.totalorder %s20, 0
      %p77 = por %p75, %p76
      %p78 = scmp.ne.s32.totalorder %s70, %s72
      %p79 = scmp.eq.s32.totalorder %s25, 5
      %p80 = por %p78, %p79
      %p81 = scmp.ne.s32.totalorder %s72, %s73
      %p82 = scmp.eq.s32.totalorder %s25, 0
      %p83 = por %p81, %p82
      %p84 = scmp.ne.s32.totalorder %s72, %s73
      %p85 = scmp.eq.s32.totalorder %s26, 5
      %p86 = por %p84, %p85
      %p88 = scmp.ne.s32.totalorder %s73, %s87
      %p89 = scmp.eq.s32.totalorder %s26, 0
      %p90 = por %p88, %p89
      %s92 = sadd.s32 %s91, 1
      %p95 = scmp.eq.s32.totalorder %s20, 5
      %p96 = scmp.ne.s32.totalorder %s91, %s93
      %p97 = scmp.eq.s32.totalorder %s20, 0
      %p98 = por %p96, %p97
      %p99 = scmp.ne.s32.totalorder %s91, %s93
      %p100 = scmp.eq.s32.totalorder %s25, 5
      %p101 = por %p99, %p100
      %p102 = scmp.ne.s32.totalorder %s93, %s94
      %p103 = scmp.eq.s32.totalorder %s25, 0
      %p104 = por %p102, %p103
      %p105 = scmp.ne.s32.totalorder %s93, %s94
      %p106 = scmp.eq.s32.totalorder %s26, 5
      %p107 = por %p105, %p106
      %p109 = scmp.ne.s32.totalorder %s94, %s108
      %p110 = scmp.eq.s32.totalorder %s26, 0
      %p111 = por %p109, %p110
      %s112 = ssub.s32 %s20, %s27
      %p113 = scmp.eq.s32.totalorder %s112, 0
      %s115 = sadd.s32 %s114, 1
      %s116 = scalar_select %p113, %s114, %s115
      %p119 = pneg %p113
      %p120 = scmp.eq.s32.totalorder %s20, 5
      %p121 = por %p119, %p120
      %p122 = scmp.ne.s32.totalorder %s114, %s117
      %p123 = scmp.eq.s32.totalorder %s20, 0
      %p124 = por %p122, %p123
      %p125 = scmp.ne.s32.totalorder %s114, %s117
      %p126 = scmp.eq.s32.totalorder %s25, 5
      %p127 = por %p125, %p126
      %p128 = scmp.ne.s32.totalorder %s117, %s118
      %p129 = scmp.eq.s32.totalorder %s25, 0
      %p130 = por %p128, %p129
      %p131 = scmp.ne.s32.totalorder %s117, %s118
      %p132 = scmp.eq.s32.totalorder %s26, 5
      %p133 = por %p131, %p132
      %p135 = scmp.ne.s32.totalorder %s118, %s134
      %p136 = scmp.eq.s32.totalorder %s26, 0
      %p137 = por %p135, %p136
      %p138 = scmp.le.s32.totalorder 1, %s20
      %p139 = scmp.lt.s32.totalorder %s20, 7
      %p140 = pnand %p138, %p139
      %p141 = pneg %p140
      // Predicated region
      $region9: #{tpu_custom_call.1} parent=5 // pred_check
        _
      $region10: #{tpu_custom_call.1} parent=5 // pred_check_branch
        %143 = sbr.rel (%p140) target = $region12
      $region11: #{tpu_custom_call.1} parent=5 // pred_region
        %s144 = ssub.s32 %s20, 1
        // Predicated region
        $region13: #{tpu_custom_call.1} parent=11 // pred_check
          %p145 = pneg %p41
        $region14: #{tpu_custom_call.1} parent=11 // pred_check_branch
          %147 = sbr.rel (%p145) target = $region16
        $region15: #{tpu_custom_call.1} parent=11 // pred_region
          _
        $region16: #{tpu_custom_call.1} parent=11 // pred_fallthru
          _
        // Predicated region
        $region17: #{tpu_custom_call.1} parent=11 // pred_check
          %p148 = pneg %p62
        $region18: #{tpu_custom_call.1} parent=11 // pred_check_branch
          %150 = sbr.rel (%p148) target = $region20
        $region19: #{tpu_custom_call.1} parent=11 // pred_region
          _
        $region20: #{tpu_custom_call.1} parent=11 // pred_fallthru
          _
        // Predicated region
        $region21: #{tpu_custom_call.1} parent=11 // pred_check
          %p151 = pneg %p83
        $region22: #{tpu_custom_call.1} parent=11 // pred_check_branch
          %153 = sbr.rel (%p151) target = $region24
        $region23: #{tpu_custom_call.1} parent=11 // pred_region
          _
        $region24: #{tpu_custom_call.1} parent=11 // pred_fallthru
          _
        // Predicated region
        $region25: #{tpu_custom_call.1} parent=11 // pred_check
          %p154 = pneg %p104
        $region26: #{tpu_custom_call.1} parent=11 // pred_check_branch
          %156 = sbr.rel (%p154) target = $region28
        $region27: #{tpu_custom_call.1} parent=11 // pred_region
          _
        $region28: #{tpu_custom_call.1} parent=11 // pred_fallthru
          _
      $region12: #{tpu_custom_call.1} parent=5 // pred_fallthru
        _
      %p157 = scmp.lt.s32.totalorder %s20, 6
      // Predicated region
      $region29: #{tpu_custom_call.1} parent=5 // pred_check
        %p158 = pneg %p157
      $region30: #{tpu_custom_call.1} parent=5 // pred_check_branch
        %160 = sbr.rel (%p158) target = $region32
      $region31: #{tpu_custom_call.1} parent=5 // pred_region
        _
      $region32: #{tpu_custom_call.1} parent=5 // pred_fallthru
        _
      %p161 = scmp.le.s32.totalorder 1, %s20
      %p162 = scmp.lt.s32.totalorder %s20, 7
      %p163 = pnand %p161, %p162
      %p164 = pneg %p163
      // Predicated region
      $region33: #{tpu_custom_call.1} parent=5 // pred_check
        _
      $region34: #{tpu_custom_call.1} parent=5 // pred_check_branch
        %166 = sbr.rel (%p163) target = $region36
      $region35: #{tpu_custom_call.1} parent=5 // pred_region
        %s167 = ssub.s32 %s20, 1
        %p168 = pneg %p41
        %p169 = pneg %p38
        %p170 = pneg %p62
        %p171 = pneg %p59
        %p172 = pneg %p83
        %p173 = pneg %p80
        %p174 = pneg %p104
        %p175 = pneg %p101
        %p176 = pneg %p130
        %p177 = pneg %p127
        %s178 = sand.u32 %s117, 1
        %s179 = scalar_lea.sflag [#allocation6], %s178
        %s180 = sand.u32 %s117, 1
        %s181 = smul.addr %s180, 4
        %s182 = scalar_lea.vmem [#allocation5], %s181
        %p183 = scmp.eq.s32.totalorder %s25, 0
        // Predicated region
        $region37: #{tpu_custom_call.1} parent=35 // pred_check
          %p184 = pneg %p183
        $region38: #{tpu_custom_call.1} parent=35 // pred_check_branch
          %186 = sbr.rel (%p184) target = $region40
        $region39: #{tpu_custom_call.1} parent=35 // pred_region
          %v187 = vld [vmem:[%s1] sm:$0x3]
          %188 = vst [vmem:[#allocation2] sm:$0x3] %v187
        $region40: #{tpu_custom_call.1} parent=35 // pred_fallthru
          _
        %s189 = smul.u32 %s25, 128
        %s190 = sld [smem:[#allocation4 + %s189]]
        %s191 = sshra.s32 %s190, 3
        %s192 = sand.u32 %s190, 7
        %s193 = sshra.s32 %s190, 3
        %s194 = sand.u32 %s190, 7
        %s195 = smul.u32 %s191, 2
        %s196 = smul.u32 %s195, 8
        %s197 = sadd.s32 %s196, %s194
        %s198 = scalar_lea.vmem %s2, %s197
        %v199 = vld [vmem:[%s198] ss:$8 sm:$0x3]
        %s200 = sadd.s32 %s189, 1
        %s201 = sld [smem:[#allocation4 + %s200]]
        %s202 = sshra.s32 %s201, 3
        %s203 = sand.u32 %s201, 7
        %s204 = sshra.s32 %s201, 3
        %s205 = sand.u32 %s201, 7
        %s206 = smul.u32 %s202, 2
        %s207 = smul.u32 %s206, 8
        %s208 = sadd.s32 %s207, %s205
        %s209 = scalar_lea.vmem %s2, %s208
        %v210 = vld [vmem:[%s209] ss:$8 sm:$0x3]
        %v212 = vlaneseq
        %v213 = vshrl.u32 %v212, 7
        %v214 = vsub.s32 0, %v213
        %v215 = vrot.slane %v199, %v214
        %v216 = vlaneseq
        %v217 = vshrl.u32 %v216, 7
        %v218 = vsub.s32 1, %v217
        %v219 = vrot.slane %v199, %v218
        %v223 = vlaneseq
        %v224 = vshrl.u32 %v223, 7
        %v225 = vsub.s32 0, %v224
        %v226 = vrot.slane %v210, %v225
        %v227 = vlaneseq
        %v228 = vshrl.u32 %v227, 7
        %v229 = vsub.s32 1, %v228
        %v230 = vrot.slane %v210, %v229
        %vm233 = vcmask 1040384
        %v234 = vsel %vm233, %v215, %v226
        %v235 = vsel %vm233, %v219, %v230
        %v236 = vld [vmem:[#allocation2] sm:$0x3]
        %v237 = vld [vmem:[%s3] sm:$0xff]
        %v238 = vld [vmem:[%s3 + $0x8] sm:$0xff]
        %v239 = vld [vmem:[%s3 + $0x10] sm:$0xff]
        %v240 = vld [vmem:[%s3 + $0x18] sm:$0xff]
        %v241 = vld [vmem:[%s3 + $0x20] sm:$0xff]
        %v242 = vld [vmem:[%s3 + $0x28] sm:$0xff]
        %v243 = vld [vmem:[%s3 + $0x30] sm:$0xff]
        %v244 = vld [vmem:[%s3 + $0x38] sm:$0xff]
        %v245 = vld [vmem:[%s3 + $0x40] sm:$0xff]
        %v246 = vld [vmem:[%s3 + $0x48] sm:$0xff]
        %v247 = vld [vmem:[%s3 + $0x50] sm:$0xff]
        %v248 = vld [vmem:[%s3 + $0x58] sm:$0xff]
        %v249 = vld [vmem:[%s3 + $0x60] sm:$0xff]
        %v250 = vld [vmem:[%s3 + $0x68] sm:$0xff]
        %v251 = vld [vmem:[%s3 + $0x70] sm:$0xff]
        %v252 = vld [vmem:[%s3 + $0x78] sm:$0xff]
        %v253 = vld [vmem:[%s3 + $0x80] sm:$0xff]
        %v254 = vld [vmem:[%s3 + $0x88] sm:$0xff]
        %v255 = vld [vmem:[%s3 + $0x90] sm:$0xff]
        %v256 = vld [vmem:[%s3 + $0x98] sm:$0xff]
        %v257 = vld [vmem:[%s3 + $0xa0] sm:$0xff]
        %v258 = vld [vmem:[%s3 + $0xa8] sm:$0xff]
        %v259 = vld [vmem:[%s3 + $0xb0] sm:$0xff]
        %v260 = vld [vmem:[%s3 + $0xb8] sm:$0xff]
        %v261 = vld [vmem:[%s3 + $0xc0] sm:$0xff]
        %v262 = vld [vmem:[%s3 + $0xc8] sm:$0xff]
        %v263 = vld [vmem:[%s3 + $0xd0] sm:$0xff]
        %v264 = vld [vmem:[%s3 + $0xd8] sm:$0xff]
        %v265 = vld [vmem:[%s3 + $0xe0] sm:$0xff]
        %v266 = vld [vmem:[%s3 + $0xe8] sm:$0xff]
        %v267 = vld [vmem:[%s3 + $0xf0] sm:$0xff]
        %v268 = vld [vmem:[%s3 + $0xf8] sm:$0xff]
        %269 = vmatprep.subr.mxu0 %v238
        %270 = vmatpush1.msra.mxu0 %v237
        %271 = vmatprep.subr.mxu0 %v240
        %272 = vmatpush1.msra.mxu0 %v239
        %273 = vmatprep.subr.mxu0 %v242
        %274 = vmatpush1.msra.mxu0 %v241
        %275 = vmatprep.subr.mxu0 %v244
        %276 = vmatpush1.msra.mxu0 %v243
        %277 = vmatprep.subr.mxu0 %v246
        %278 = vmatpush1.msra.mxu0 %v245
        %279 = vmatprep.subr.mxu0 %v248
        %280 = vmatpush1.msra.mxu0 %v247
        %281 = vmatprep.subr.mxu0 %v250
        %282 = vmatpush1.msra.mxu0 %v249
        %283 = vmatprep.subr.mxu0 %v252
        %284 = vmatpush1.msra.mxu0 %v251
        %285 = vmatprep.subr.mxu0 %v254
        %286 = vmatpush1.msra.mxu0 %v253
        %287 = vmatprep.subr.mxu0 %v256
        %288 = vmatpush1.msra.mxu0 %v255
        %289 = vmatprep.subr.mxu0 %v258
        %290 = vmatpush1.msra.mxu0 %v257
        %291 = vmatprep.subr.mxu0 %v260
        %292 = vmatpush1.msra.mxu0 %v259
        %293 = vmatprep.subr.mxu0 %v262
        %294 = vmatpush1.msra.mxu0 %v261
        %295 = vmatprep.subr.mxu0 %v264
        %296 = vmatpush1.msra.mxu0 %v263
        %297 = vmatprep.subr.mxu0 %v266
        %298 = vmatpush1.msra.mxu0 %v265
        %299 = vmatprep.subr.mxu0 %v268
        %300 = vmatpush1.msra.mxu0 %v267
        %301 = vmatprep.subr.mxu0 0.0
        %302 = vmatpush1.msra.mxu0 0.0
        %303 = vmatprep.subr.mxu0 0.0
        %304 = vmatpush1.msra.mxu0 0.0
        %305 = vmatprep.subr.mxu0 0.0
        %306 = vmatpush1.msra.mxu0 0.0
        %307 = vmatprep.subr.mxu0 0.0
        %308 = vmatpush1.msra.mxu0 0.0
        %309 = vmatprep.subr.mxu0 0.0
        %310 = vmatpush1.msra.mxu0 0.0
        %311 = vmatprep.subr.mxu0 0.0
        %312 = vmatpush1.msra.mxu0 0.0
        %313 = vmatprep.subr.mxu0 0.0
        %314 = vmatpush1.msra.mxu0 0.0
        %315 = vmatprep.subr.mxu0 0.0
        %316 = vmatpush1.msra.mxu0 0.0
        %317 = vmatprep.subr.mxu0 0.0
        %318 = vmatpush1.msra.mxu0 0.0
        %319 = vmatprep.subr.mxu0 0.0
        %320 = vmatpush1.msra.mxu0 0.0
        %321 = vmatprep.subr.mxu0 0.0
        %322 = vmatpush1.msra.mxu0 0.0
        %323 = vmatprep.subr.mxu0 0.0
        %324 = vmatpush1.msra.mxu0 0.0
        %325 = vmatprep.subr.mxu0 0.0
        %326 = vmatpush1.msra.mxu0 0.0
        %327 = vmatprep.subr.mxu0 0.0
        %328 = vmatpush1.msra.mxu0 0.0
        %329 = vmatprep.subr.mxu0 0.0
        %330 = vmatpush1.msra.mxu0 0.0
        %331 = vmatprep.subr.mxu0 0.0
        %332 = vmatpush1.msra.mxu0 0.0
        %333 = vmatprep.mubr.f32.mxu0 0.0
        %334 = vmatmul.mubr.f32.gmra.mrb[0].mxu0 %v236
        %v335 = vpop.f32.mrb[0].mxu0
        %v336 = vadd.f32 0.0, %v335
        %v337 = vpop.f32.mrb[0].mxu0
        %v338 = vadd.f32 0.0, %v337
        %339 = vdwg.mxu0
        %v340 = vadd.f32 %v234, %v336
        %v341 = vadd.f32 %v235, %v338
        %v342 = vld [vmem:[%s4] sm:$0x3]
        %v344 = vlaneseq
        %v345 = vshrl.u32 %v344, 7
        %v346 = vsub.s32 0, %v345
        %v347 = vrot.slane %v342, %v346
        %v348 = vlaneseq
        %v349 = vshrl.u32 %v348, 7
        %v350 = vsub.s32 1, %v349
        %v351 = vrot.slane %v342, %v350
        %v354 = vadd.f32 %v340, %v347
        %v355 = vadd.f32 %v341, %v351
        %vm356 = vcmask 140288
        %v357 = vsel %vm356, %v355, -inf
        %358 = vmax.xlane.f32.xlu0 %v357
        %v359 = vpop.xlane.xlu0 %358
        %v360 = vsub.f32 %v355, %v359
        %v361 = vmul.f32 %v360, 1.442695
        %v362 = vpow.pop %v361
        %v363 = vsel %vm356, %v362, 0.0
        %364 = vadd.xlane.f32.xlu0 %v363
        %v365 = vpop.xlane.xlu0 %364
        %v366 = vlog2.pop %v365
        %v367 = vmul.f32 %v366, 0.6931472
        %v368 = vsub.f32 %v360, %v367
        %369 = vst [vmem:[#allocation2] sm:$0x3] %v354
        %v372 = vcombine.low %v354, %v368
        %v374 = vunpack.c.l.s4 1983009808
        %v375 = vunpack.c.0.s8 %v374
        %v376 = vlaneseq
        %v377 = vshrl.u32 %v376, 7
        %v378 = vsub.s32 %v375, %v377
        %v379 = vrot.slane %v372, %v378
        %vm381 = vcmask 1041408
        %vm382 = vcmask 142338
        %vm383 = vmor %vm382, %vm381
        %384 = vst.msk [vmem:[%s182] sm:$0xf] %vm383, %v379
        %s385 = sand.u32 %s117, 1
        %s386 = scalar_lea.sflag [#allocation6], %s385
        %s387 = sand.u32 %s117, 1
        %s388 = smul.addr %s387, 4
        %s389 = scalar_lea.vmem [#allocation5], %s388
        // Predicated region
        $region41: #{tpu_custom_call.1} parent=35 // pred_check
          %p390 = pneg %p127
        $region42: #{tpu_custom_call.1} parent=35 // pred_check_branch
          %392 = sbr.rel (%p390) target = $region44
        $region43: #{tpu_custom_call.1} parent=35 // pred_region
          %s394 = ssub.s32 64, 64
          %395 = vsyncadd %s386, %s394
          %s396 = smul.addr %s25, 2
          %s397 = smul.addr %s396, 32
          %s398 = scalar_lea.hbm %s5, %s397
          %s400 = sshll.u32 %s389, 4
          %s401 = int_to_ptr.vmem [resolvable:$true] %s400
          %403 = dma.vmem_to_hbm [thread:$0]  %s401, 64, %s398, %s386
        $region44: #{tpu_custom_call.1} parent=35 // pred_fallthru
          _
      $region36: #{tpu_custom_call.1} parent=5 // pred_fallthru
        _
      %p404 = scmp.le.s32.totalorder 2, %s20
      // Predicated region
      $region45: #{tpu_custom_call.1} parent=5 // pred_check
        %p405 = pneg %p404
      $region46: #{tpu_custom_call.1} parent=5 // pred_check_branch
        %407 = sbr.rel (%p405) target = $region48
      $region47: #{tpu_custom_call.1} parent=5 // pred_region
        %s408 = ssub.s32 %s20, 2
        // Predicated region
        $region49: #{tpu_custom_call.1} parent=47 // pred_check
          %p409 = pneg %p133
        $region50: #{tpu_custom_call.1} parent=47 // pred_check_branch
          %411 = sbr.rel (%p409) target = $region52
        $region51: #{tpu_custom_call.1} parent=47 // pred_region
          %s412 = sand.u32 %s118, 1
          %s413 = scalar_lea.sflag [#allocation6], %s412
          %s414 = sand.u32 %s118, 1
          %s415 = smul.addr %s414, 4
          %s416 = scalar_lea.vmem [#allocation5], %s415
          %417 = dma.done %s413, 64
        $region52: #{tpu_custom_call.1} parent=47 // pred_fallthru
          _
      $region48: #{tpu_custom_call.1} parent=5 // pred_fallthru
        _
    $region6: #{tpu_custom_call.1} parent=1 // loop_footer
      %s24 = sadd.s32 1, %s20
    $region7: #{tpu_custom_call.1} parent=1 // loop_footer_branch
      %19 = sbr.rel target = $region3
    $region8: #{tpu_custom_call.1} parent=1 // loop_exit
      _
    %418 = vsyncpa [#allocation6], 1
    %s419 = scalar_lea.sflag [#allocation6], 1
    %420 = vsyncpa %s419, 1

</llo_original>
